<compile_context>
chip_gen: v7x
topology: tpu7x:2x2x1
jax: 0.10.0
libtpu: 0.0.40
codegen_flags: <defaults>
</compile_context>

<pallas_src>
import functools

import jax
import jax.numpy as jnp
from jax.experimental import pallas as pl
from jax.experimental.pallas import tpu as pltpu


# ----------------------------- Pallas kernel -------------------------------

def _shift_rows(x, off):
    """result[:, t, :] = x[:, t + off, :]; zero where t + off is out of range."""
    if off == 0:
        return x
    tb, seq, ch = x.shape
    zeros = jnp.zeros((tb, abs(off), ch), x.dtype)
    if off > 0:
        return jnp.concatenate([x[:, off:, :], zeros], axis=1)
    return jnp.concatenate([zeros, x[:, : seq + off, :]], axis=1)


def series_decomp_kernel(x_ref, trend_ref, res_ref, *, k):
    x = x_ref[...].astype(jnp.float32)              # (TB, L, C)
    p = k // 2
    acc = jnp.zeros_like(x)
    for j in range(k):                              # k is small & static: unrolled taps
        acc = acc + _shift_rows(x, j - p)
    trend = acc * (1.0 / k)                         # count_include_pad=True -> divide by k
    trend_ref[...] = trend.astype(trend_ref.dtype)
    res_ref[...] = (x - trend).astype(res_ref.dtype)


# ------------------------------ wrapper -------------------------------------

def series_decomp(x, k=3, block_b=None):
    B, L, C = x.shape
    if block_b is None:
        # largest divisor of B not exceeding 8 (amortize grid overhead,
        # avoid boundary blocks)
        block_b = max(d for d in range(1, min(B, 8) + 1) if B % d == 0)
    grid = (B // block_b,)

    def bmap(b):
        return (b, 0, 0)

    blk = (block_b, L, C)
    trend, res = pl.pallas_call(
        functools.partial(series_decomp_kernel, k=k),
        grid=grid,
        in_specs=[pl.BlockSpec(blk, bmap)],
        out_specs=(pl.BlockSpec(blk, bmap), pl.BlockSpec(blk, bmap)),
        out_shape=(jax.ShapeDtypeStruct((B, L, C), x.dtype),
                   jax.ShapeDtypeStruct((B, L, C), x.dtype)),
        compiler_params=pltpu.CompilerParams(
            dimension_semantics=("parallel",)),
    )(x)
    return trend, res


# ----------------------------- pure-JAX reference ----------------------------

def series_decomp_ref(x, k=3):
    p = k // 2
    B, L, C = x.shape
    xp = jnp.pad(x, ((0, 0), (p, k - 1 - p), (0, 0)))
    acc = jnp.zeros_like(x)
    for j in range(k):
        acc = acc + xp[:, j:j + L, :]
    trend = acc / k
    return trend, x - trend


# --------------------------------- main --------------------------------------

if __name__ == "__main__":
    B, L, C = 2, 8, 4          # (batch, seq, channels), matching the module's input
    k = 3                      # SeriesDecomp default kernel size

    key = jax.random.PRNGKey(0)
    x = jax.random.normal(key, (B, L, C), jnp.float32)

    trend, res = series_decomp(x, k=k)
    jax.block_until_ready((trend, res))

    trend_ref, res_ref = series_decomp_ref(x, k=k)
    assert trend.shape == (B, L, C) and res.shape == (B, L, C)
    assert jnp.allclose(trend, trend_ref, atol=1e-6, rtol=1e-6)
    assert jnp.allclose(res, res_ref, atol=1e-6, rtol=1e-6)
    assert jnp.allclose(trend + res, x, atol=1e-6, rtol=1e-6)
    print("KERNEL_OK")
</pallas_src>

<mosaic_0001>
module attributes {stable_mosaic.version = 11 : i64} {
  func.func @series_decomp_kernel(%arg0: i32, %arg1: memref<2x8x4xf32, #tpu.memory_space<vmem>>, %arg2: memref<2x8x4xf32, #tpu.memory_space<vmem>>, %arg3: memref<2x8x4xf32, #tpu.memory_space<vmem>>) attributes {dimension_semantics = [#tpu.dimension_semantics<parallel>], iteration_bounds = array<i64: 1>, scalar_prefetch = 0 : i64, scratch_operands = 0 : i64, tpu.core_type = #tpu.core_type<tc>, window_params = [{transform_indices = @transform_0, window_bounds = array<i64: 2, 8, 4>}, {transform_indices = @transform_1, window_bounds = array<i64: 2, 8, 4>}, {transform_indices = @transform_2, window_bounds = array<i64: 2, 8, 4>}]} {
    %c0 = arith.constant 0 : index
    %c0_0 = arith.constant 0 : index
    %c0_1 = arith.constant 0 : index
    %0 = vector.load %arg1[%c0, %c0_0, %c0_1] : memref<2x8x4xf32, #tpu.memory_space<vmem>>, vector<2x8x4xf32>
    %cst = arith.constant 0.000000e+00 : f32
    %1 = vector.broadcast %cst : f32 to vector<2x8x4xf32>
    %cst_2 = arith.constant 0.000000e+00 : f32
    %2 = vector.broadcast %cst_2 : f32 to vector<2x1x4xf32>
    %3 = vector.extract_strided_slice %0 {offsets = [0, 0, 0], sizes = [2, 7, 4], strides = [1, 1, 1]} : vector<2x8x4xf32> to vector<2x7x4xf32>
    %4 = tpu.concatenate %2, %3 in 1 : vector<2x1x4xf32>, vector<2x7x4xf32> -> vector<2x8x4xf32>
    %5 = arith.addf %1, %4 : vector<2x8x4xf32>
    %6 = arith.addf %5, %0 : vector<2x8x4xf32>
    %cst_3 = arith.constant 0.000000e+00 : f32
    %7 = vector.broadcast %cst_3 : f32 to vector<2x1x4xf32>
    %8 = vector.extract_strided_slice %0 {offsets = [0, 1, 0], sizes = [2, 7, 4], strides = [1, 1, 1]} : vector<2x8x4xf32> to vector<2x7x4xf32>
    %9 = tpu.concatenate %8, %7 in 1 : vector<2x7x4xf32>, vector<2x1x4xf32> -> vector<2x8x4xf32>
    %10 = arith.addf %6, %9 : vector<2x8x4xf32>
    %cst_4 = arith.constant 0.333333343 : f32
    %11 = vector.broadcast %cst_4 : f32 to vector<2x8x4xf32>
    %12 = arith.mulf %10, %11 : vector<2x8x4xf32>
    %c0_5 = arith.constant 0 : index
    %c0_6 = arith.constant 0 : index
    %c0_7 = arith.constant 0 : index
    %13 = vector.load %arg2[%c0_5, %c0_6, %c0_7] : memref<2x8x4xf32, #tpu.memory_space<vmem>>, vector<2x8x4xf32>
    tpu.vector_store %arg2[%c0_5, %c0_6, %c0_7], %12 {strides = array<i32>} : memref<2x8x4xf32, #tpu.memory_space<vmem>>, vector<2x8x4xf32>,
    %14 = arith.subf %0, %12 : vector<2x8x4xf32>
    %c0_8 = arith.constant 0 : index
    %c0_9 = arith.constant 0 : index
    %c0_10 = arith.constant 0 : index
    %15 = vector.load %arg3[%c0_8, %c0_9, %c0_10] : memref<2x8x4xf32, #tpu.memory_space<vmem>>, vector<2x8x4xf32>
    tpu.vector_store %arg3[%c0_8, %c0_9, %c0_10], %14 {strides = array<i32>} : memref<2x8x4xf32, #tpu.memory_space<vmem>>, vector<2x8x4xf32>,
    return
  }
  func.func @transform_0(%arg0: i32) -> (i32, i32, i32) {
    %c0_i32 = arith.constant 0 : i32
    %c0_i32_0 = arith.constant 0 : i32
    %c0_i32_1 = arith.constant 0 : i32
    return %arg0, %c0_i32, %c0_i32_0 : i32, i32, i32
  }
  func.func @transform_1(%arg0: i32) -> (i32, i32, i32) {
    %c0_i32 = arith.constant 0 : i32
    %c0_i32_0 = arith.constant 0 : i32
    %c0_i32_1 = arith.constant 0 : i32
    return %arg0, %c0_i32, %c0_i32_0 : i32, i32, i32
  }
  func.func @transform_2(%arg0: i32) -> (i32, i32, i32) {
    %c0_i32 = arith.constant 0 : i32
    %c0_i32_0 = arith.constant 0 : i32
    %c0_i32_1 = arith.constant 0 : i32
    return %arg0, %c0_i32, %c0_i32_0 : i32, i32, i32
  }
}

</mosaic_0001>

<llo_original>
// kernel: tpu_custom_call.1
$region0: #{tpu_custom_call.1}
  #allocation0 [shape = 'u32[]', space=smem, size = 0x4, offset = 0x4, fixed_abs, tag = 'smem constant byte address 0x4 - core index']
  #allocation1 [shape = 'u32[144,128]{1,0:T(1,128)}', space=vmem, size = 0x12000, scoped, tag = 'internal scratch']
  %s0 = inlined_call_operand.vmem [shape: f32[2,8,4], index: 0, kind: input, shape index: {}]
  %s1 = inlined_call_operand.vmem [shape: f32[2,8,4], index: 1, kind: output, shape index: {0}]
  %s2 = inlined_call_operand.vmem [shape: f32[2,8,4], index: 2, kind: output, shape index: {1}]
  %3 = xla_tuple %s1, %s2
  %s4 = sld [smem:[#allocation0]]
  $region22: #{tpu_custom_call.1} parent=0
    _
  %s6 = ssub.s32 1, %s4
  %s7 = scalar_select 0, %s6, %s4
  // Predicated region
  $region2: #{tpu_custom_call.1} parent=0 // pred_check
    _
  $region3: #{tpu_custom_call.1} parent=0 // pred_check_branch
    %9 = sbr.rel (0) target = $region5
  $region4: #{tpu_custom_call.1} parent=0 // pred_region
    _
  $region5: #{tpu_custom_call.1} parent=0 // pred_fallthru
    _
  %v10 = vld [vmem:[%s0] sm:$0xff]
  %v11 = vld [vmem:[%s0 + $0x8] sm:$0xff]
  %v14 = vrot.slane %v10, 7
  %v15 = vrot.slane %v11, 7
  %vm18 = vcmask 1040384
  %v19 = vsel %vm18, 0.0, %v14
  %v20 = vsel %vm18, 0.0, %v15
  %v21 = vadd.f32 %v19, 0.0
  %v22 = vadd.f32 %v20, 0.0
  %v23 = vadd.f32 %v21, %v10
  %v24 = vadd.f32 %v22, %v11
  %v25 = vrot.slane %v10, 1
  %v26 = vrot.slane %v11, 1
  %vm29 = vcmask 1046528
  %v30 = vsel %vm29, %v25, 0.0
  %v31 = vsel %vm29, %v26, 0.0
  %v32 = vadd.f32 %v23, %v30
  %v33 = vadd.f32 %v24, %v31
  %v34 = vmul.f32 %v32, 0.33333334
  %v35 = vmul.f32 %v33, 0.33333334
  %vm36 = vcmask 31744
  %37 = vst.msk [vmem:[%s1] sm:$0xff] %vm36, %v34
  %38 = vst.msk [vmem:[%s1 + $0x8] sm:$0xff] %vm36, %v35
  %v39 = vsub.f32 %v10, %v34
  %v40 = vsub.f32 %v11, %v35
  %41 = vst.msk [vmem:[%s2] sm:$0xff] %vm36, %v39
  %42 = vst.msk [vmem:[%s2 + $0x8] sm:$0xff] %vm36, %v40
  // Predicated region
  $region6: #{tpu_custom_call.1} parent=0 // pred_check
    _
  $region7: #{tpu_custom_call.1} parent=0 // pred_check_branch
    %44 = sbr.rel (0) target = $region9
  $region8: #{tpu_custom_call.1} parent=0 // pred_region
    _
  $region9: #{tpu_custom_call.1} parent=0 // pred_fallthru
    _
  // Predicated region
  $region10: #{tpu_custom_call.1} parent=0 // pred_check
    _
  $region11: #{tpu_custom_call.1} parent=0 // pred_check_branch
    %46 = sbr.rel (0) target = $region13
  $region12: #{tpu_custom_call.1} parent=0 // pred_region
    _
  $region13: #{tpu_custom_call.1} parent=0 // pred_fallthru
    _
  // Predicated region
  $region14: #{tpu_custom_call.1} parent=0 // pred_check
    _
  $region15: #{tpu_custom_call.1} parent=0 // pred_check_branch
    %48 = sbr.rel (0) target = $region17
  $region16: #{tpu_custom_call.1} parent=0 // pred_region
    _
  $region17: #{tpu_custom_call.1} parent=0 // pred_fallthru
    _
  // Predicated region
  $region18: #{tpu_custom_call.1} parent=0 // pred_check
    _
  $region19: #{tpu_custom_call.1} parent=0 // pred_check_branch
    %50 = sbr.rel (0) target = $region21
  $region20: #{tpu_custom_call.1} parent=0 // pred_region
    _
  $region21: #{tpu_custom_call.1} parent=0 // pred_fallthru
    _

</llo_original>
